<compile_context>
chip_gen: v5e
topology: v5e:2x2
jax: 0.10.0
libtpu: 0.0.40
codegen_flags: <defaults>
</compile_context>

<pallas_src>
import functools

import jax
import jax.numpy as jnp
from jax.experimental import pallas as pl
from jax.experimental.pallas import tpu as pltpu


# ----------------------------------------------------------------------------
# Kernel
# ----------------------------------------------------------------------------
def _layernorm_kernel(x_ref, g_ref, o_ref, *, eps):
    # x_ref: (TB, C, TL) block, g_ref: (1, C, 1), o_ref: (TB, C, TL)
    x = x_ref[...].astype(jnp.float32)

    # mean / biased variance over the channel (sublane) axis
    mean = jnp.mean(x, axis=1, keepdims=True)            # (TB, 1, TL)
    centered = x - mean
    var = jnp.mean(centered * centered, axis=1, keepdims=True)

    inv = jax.lax.rsqrt(var + eps)                       # EUP rsqrt (free slot)
    y = centered * inv * g_ref[...].astype(jnp.float32)
    o_ref[...] = y.astype(o_ref.dtype)


# ----------------------------------------------------------------------------
# Wrapper
# ----------------------------------------------------------------------------
def layer_norm(x, g, *, target_block_bytes=2 * 1024 * 1024):
    """x: (B, C, L); g: (1, C, 1). Normalizes over the channel dim (dim=1)."""
    B, C, L = x.shape
    assert g.shape == (1, C, 1), g.shape

    eps = 1e-5 if x.dtype == jnp.float32 else 1e-3
    itemsize = jnp.dtype(x.dtype).itemsize

    # --- tile selection -------------------------------------------------
    # L tile: a multiple of 128 (lane constraint) dividing L, as large as
    # fits the per-step byte budget; fall back to full L otherwise (a block
    # dim equal to the full array extent is always legal).
    if L % 128 == 0:
        cands = [d for d in range(128, L + 1, 128) if L % d == 0]
        fit = [d for d in cands if C * d * itemsize <= target_block_bytes]
        tl = max(fit) if fit else min(cands)
    else:
        tl = L
    per_item_bytes = C * tl * itemsize

    # Batch tile: largest divisor of B whose block still fits the budget,
    # so several batch items share one grid step (amortizes step overhead).
    tb = 1
    for cand in range(1, B + 1):
        if B % cand == 0 and cand * per_item_bytes <= target_block_bytes:
            tb = cand

    grid = (B // tb, L // tl)

    kernel = functools.partial(_layernorm_kernel, eps=eps)
    return pl.pallas_call(
        kernel,
        out_shape=jax.ShapeDtypeStruct((B, C, L), x.dtype),
        grid=grid,
        in_specs=[
            pl.BlockSpec((tb, C, tl), lambda i, j: (i, 0, j)),
            pl.BlockSpec((1, C, 1), lambda i, j: (0, 0, 0)),
        ],
        out_specs=pl.BlockSpec((tb, C, tl), lambda i, j: (i, 0, j)),
        compiler_params=pltpu.CompilerParams(
            dimension_semantics=("parallel", "parallel"),
        ),
    )(x, g)


# ----------------------------------------------------------------------------
# Driver
# ----------------------------------------------------------------------------
if __name__ == "__main__":
    B, C, L = 2, 32, 256

    key = jax.random.PRNGKey(0)
    kx, kg = jax.random.split(key, 2)
    x = jax.random.normal(kx, (B, C, L), dtype=jnp.float32)
    g = 1.0 + 0.1 * jax.random.normal(kg, (1, C, 1), dtype=jnp.float32)

    out = jax.block_until_ready(layer_norm(x, g))

    def ref(xv, gv, eps):
        xf = xv.astype(jnp.float32)
        mean = jnp.mean(xf, axis=1, keepdims=True)
        var = jnp.mean((xf - mean) ** 2, axis=1, keepdims=True)
        y = (xf - mean) * jax.lax.rsqrt(var + eps) * gv.astype(jnp.float32)
        return y.astype(xv.dtype)

    r32 = ref(x, g, 1e-5)
    assert jnp.allclose(out, r32, rtol=1e-5, atol=1e-5), float(
        jnp.max(jnp.abs(out - r32))
    )

    # bf16 path: inputs stay bf16 in HBM (eps = 1e-3 per the module); the f32
    # upcast happens inside the kernel.
    xb = x.astype(jnp.bfloat16)
    gb = g.astype(jnp.bfloat16)
    outb = jax.block_until_ready(layer_norm(xb, gb))
    rb = ref(xb, gb, 1e-3)
    assert jnp.allclose(
        outb.astype(jnp.float32), rb.astype(jnp.float32), rtol=5e-2, atol=5e-2
    )

    print("KERNEL_OK")
</pallas_src>

<mosaic_0001>
module attributes {stable_mosaic.version = 11 : i64} {
  func.func @_layernorm_kernel(%arg0: i32, %arg1: i32, %arg2: memref<2x32x256xf32, #tpu.memory_space<vmem>>, %arg3: memref<1x32x1xf32, #tpu.memory_space<vmem>>, %arg4: memref<2x32x256xf32, #tpu.memory_space<vmem>>) attributes {dimension_semantics = [#tpu.dimension_semantics<parallel>, #tpu.dimension_semantics<parallel>], iteration_bounds = array<i64: 1, 1>, scalar_prefetch = 0 : i64, scratch_operands = 0 : i64, tpu.core_type = #tpu.core_type<tc>, window_params = [{transform_indices = @transform_0, window_bounds = array<i64: 2, 32, 256>}, {pipeline_mode = #tpu.pipeline_mode<synchronous>, transform_indices = @transform_1, window_bounds = array<i64: 1, 32, 1>}, {transform_indices = @transform_2, window_bounds = array<i64: 2, 32, 256>}]} {
    %c0 = arith.constant 0 : index
    %c0_0 = arith.constant 0 : index
    %c0_1 = arith.constant 0 : index
    %0 = vector.load %arg2[%c0, %c0_0, %c0_1] : memref<2x32x256xf32, #tpu.memory_space<vmem>>, vector<2x32x256xf32>
    %cst = arith.constant dense<0.000000e+00> : vector<2x256xf32>
    %1 = vector.multi_reduction <add>, %0, %cst [1] : vector<2x32x256xf32> to vector<2x256xf32>
    %2 = vector.shape_cast %1 : vector<2x256xf32> to vector<2x1x256xf32>
    %cst_2 = arith.constant 3.200000e+01 : f32
    %3 = vector.broadcast %cst_2 : f32 to vector<2x1x256xf32>
    %4 = arith.divf %2, %3 : vector<2x1x256xf32>
    %5 = vector.broadcast %4 : vector<2x1x256xf32> to vector<2x32x256xf32>
    %6 = arith.subf %0, %5 : vector<2x32x256xf32>
    %7 = arith.mulf %6, %6 : vector<2x32x256xf32>
    %cst_3 = arith.constant dense<0.000000e+00> : vector<2x256xf32>
    %8 = vector.multi_reduction <add>, %7, %cst_3 [1] : vector<2x32x256xf32> to vector<2x256xf32>
    %9 = vector.shape_cast %8 : vector<2x256xf32> to vector<2x1x256xf32>
    %cst_4 = arith.constant 3.200000e+01 : f32
    %10 = vector.broadcast %cst_4 : f32 to vector<2x1x256xf32>
    %11 = arith.divf %9, %10 : vector<2x1x256xf32>
    %cst_5 = arith.constant 9.99999974E-6 : f32
    %12 = vector.broadcast %cst_5 : f32 to vector<2x1x256xf32>
    %13 = arith.addf %11, %12 : vector<2x1x256xf32>
    %14 = math.rsqrt %13 : vector<2x1x256xf32>
    %15 = vector.broadcast %14 : vector<2x1x256xf32> to vector<2x32x256xf32>
    %16 = arith.mulf %6, %15 : vector<2x32x256xf32>
    %c0_6 = arith.constant 0 : index
    %c0_7 = arith.constant 0 : index
    %c0_8 = arith.constant 0 : index
    %17 = vector.load %arg3[%c0_6, %c0_7, %c0_8] : memref<1x32x1xf32, #tpu.memory_space<vmem>>, vector<1x32x1xf32>
    %18 = vector.broadcast %17 : vector<1x32x1xf32> to vector<2x32x256xf32>
    %19 = arith.mulf %16, %18 : vector<2x32x256xf32>
    %c0_9 = arith.constant 0 : index
    %c0_10 = arith.constant 0 : index
    %c0_11 = arith.constant 0 : index
    %20 = vector.load %arg4[%c0_9, %c0_10, %c0_11] : memref<2x32x256xf32, #tpu.memory_space<vmem>>, vector<2x32x256xf32>
    tpu.vector_store %arg4[%c0_9, %c0_10, %c0_11], %19 {strides = array<i32>} : memref<2x32x256xf32, #tpu.memory_space<vmem>>, vector<2x32x256xf32>,
    return
  }
  func.func @transform_0(%arg0: i32, %arg1: i32) -> (i32, i32, i32) {
    %c0_i32 = arith.constant 0 : i32
    %c0_i32_0 = arith.constant 0 : i32
    return %arg0, %c0_i32, %arg1 : i32, i32, i32
  }
  func.func @transform_1(%arg0: i32, %arg1: i32) -> (i32, i32, i32) {
    %c0_i32 = arith.constant 0 : i32
    %c0_i32_0 = arith.constant 0 : i32
    %c0_i32_1 = arith.constant 0 : i32
    %c0_i32_2 = arith.constant 0 : i32
    return %c0_i32, %c0_i32_0, %c0_i32_1 : i32, i32, i32
  }
  func.func @transform_2(%arg0: i32, %arg1: i32) -> (i32, i32, i32) {
    %c0_i32 = arith.constant 0 : i32
    %c0_i32_0 = arith.constant 0 : i32
    return %arg0, %c0_i32, %arg1 : i32, i32, i32
  }
}

</mosaic_0001>

<llo_original>
// kernel: tpu_custom_call.1
$region0: #{tpu_custom_call.1}
  #allocation0 [shape = 'u32[]', space=smem, size = 0x4, offset = 0x4, fixed_abs, tag = 'smem constant byte address 0x4 - core index']
  #allocation1 [shape = 'u32[72,128]{1,0:T(1,128)}', space=vmem, size = 0x9000, scoped, tag = 'internal scratch']
  %s0 = inlined_call_operand.hbm [shape: f32[2,32,256], index: 0, kind: input, shape index: {}]
  %s1 = inlined_call_operand.vmem [shape: f32[1,32,1], index: 1, kind: input, shape index: {}]
  %s2 = inlined_call_operand.hbm [shape: f32[2,32,256], index: 2, kind: output, shape index: {}]
  %s3 = sld [smem:[#allocation0]]
  $region22: #{tpu_custom_call.1} parent=0
    _
  %s5 = ssub.s32 1, %s3
  %s6 = scalar_select 0, %s5, %s3
  $region1: #{tpu_custom_call.1} parent=0
    #allocation2 [shape = 'u8[65536]{0}', space=vmem, size = 0x10000, scoped, tag = 'input window, operand 0, single buffered']
    #allocation3 [shape = 's32[1]{0}', space=sflag, size = 0x4, scoped, tag = 'scoped memory for tpu_custom_call.1']
    #allocation4 [shape = 's32[1]{0}', space=sflag, size = 0x4, scoped, tag = 'scoped memory for tpu_custom_call.1']
    #allocation5 [shape = 'u8[65536]{0}', space=vmem, size = 0x10000, scoped, tag = 'output window, operand 0, single buffered']
    %7 = vsyncpa [#allocation3], 0
    %8 = vsyncpa [#allocation4], 0
    // Predicated region
    $region2: #{tpu_custom_call.1} parent=1 // pred_check
      _
    $region3: #{tpu_custom_call.1} parent=1 // pred_check_branch
      %10 = sbr.rel (0) target = $region5
    $region4: #{tpu_custom_call.1} parent=1 // pred_region
      %12 = vsyncadd [#allocation3], 0
      %s13 = sshll.u32 %s0, 4
      %s14 = int_to_ptr.hbm [resolvable:$true] %s13
      %s15 = sshll.u32 [#allocation2], 4
      %s16 = int_to_ptr.vmem [resolvable:$true] %s15
      %21 = dma.hbm_to_vmem [thread:$0]  %s14, 2048, %s16, [#allocation3], 256, 256, 16
    $region5: #{tpu_custom_call.1} parent=1 // pred_fallthru
      _
    // Predicated region
    $region6: #{tpu_custom_call.1} parent=1 // pred_check
      _
    $region7: #{tpu_custom_call.1} parent=1 // pred_check_branch
      %23 = sbr.rel (0) target = $region9
    $region8: #{tpu_custom_call.1} parent=1 // pred_region
      _
    $region9: #{tpu_custom_call.1} parent=1 // pred_fallthru
      _
    // Predicated region
    $region10: #{tpu_custom_call.1} parent=1 // pred_check
      _
    $region11: #{tpu_custom_call.1} parent=1 // pred_check_branch
      %25 = sbr.rel (0) target = $region13
    $region12: #{tpu_custom_call.1} parent=1 // pred_region
      %27 = dma.done [#allocation3], 2048
    $region13: #{tpu_custom_call.1} parent=1 // pred_fallthru
      _
    %v28 = vld [vmem:[#allocation2] sm:$0xff]
    %v29 = vld [vmem:[#allocation2 + $0x8] sm:$0xff]
    %v30 = vld [vmem:[#allocation2 + $0x10] sm:$0xff]
    %v31 = vld [vmem:[#allocation2 + $0x18] sm:$0xff]
    %v32 = vld [vmem:[#allocation2 + $0x20] sm:$0xff]
    %v33 = vld [vmem:[#allocation2 + $0x28] sm:$0xff]
    %v34 = vld [vmem:[#allocation2 + $0x30] sm:$0xff]
    %v35 = vld [vmem:[#allocation2 + $0x38] sm:$0xff]
    %v36 = vld [vmem:[#allocation2 + $0x40] sm:$0xff]
    %v37 = vld [vmem:[#allocation2 + $0x48] sm:$0xff]
    %v38 = vld [vmem:[#allocation2 + $0x50] sm:$0xff]
    %v39 = vld [vmem:[#allocation2 + $0x58] sm:$0xff]
    %v40 = vld [vmem:[#allocation2 + $0x60] sm:$0xff]
    %v41 = vld [vmem:[#allocation2 + $0x68] sm:$0xff]
    %v42 = vld [vmem:[#allocation2 + $0x70] sm:$0xff]
    %v43 = vld [vmem:[#allocation2 + $0x78] sm:$0xff]
    %v44 = vadd.f32 %v28, %v30
    %v45 = vadd.f32 %v44, %v32
    %v46 = vadd.f32 %v45, %v34
    %v47 = vrot.slane %v46, 4
    %v48 = vadd.f32 %v46, %v47
    %v49 = vrot.slane %v48, 2
    %v50 = vadd.f32 %v48, %v49
    %v51 = vrot.slane %v50, 1
    %v52 = vadd.f32 %v50, %v51
    %v53 = vadd.f32 %v29, %v31
    %v54 = vadd.f32 %v53, %v33
    %v55 = vadd.f32 %v54, %v35
    %v56 = vrot.slane %v55, 4
    %v57 = vadd.f32 %v55, %v56
    %v58 = vrot.slane %v57, 2
    %v59 = vadd.f32 %v57, %v58
    %v60 = vrot.slane %v59, 1
    %v61 = vadd.f32 %v59, %v60
    %v62 = vadd.f32 %v36, %v38
    %v63 = vadd.f32 %v62, %v40
    %v64 = vadd.f32 %v63, %v42
    %v65 = vrot.slane %v64, 4
    %v66 = vadd.f32 %v64, %v65
    %v67 = vrot.slane %v66, 2
    %v68 = vadd.f32 %v66, %v67
    %v69 = vrot.slane %v68, 1
    %v70 = vadd.f32 %v68, %v69
    %v71 = vadd.f32 %v37, %v39
    %v72 = vadd.f32 %v71, %v41
    %v73 = vadd.f32 %v72, %v43
    %v74 = vrot.slane %v73, 4
    %v75 = vadd.f32 %v73, %v74
    %v76 = vrot.slane %v75, 2
    %v77 = vadd.f32 %v75, %v76
    %v78 = vrot.slane %v77, 1
    %v79 = vadd.f32 %v77, %v78
    %v80 = vrcp.pop 32.0
    %v81 = vmul.f32 32.0, %v80
    %v82 = vsub.f32 1.0, %v81
    %v83 = vmul.f32 %v80, %v82
    %v84 = vadd.f32 %v80, %v83
    %vm85 = vweird.f32 %v80
    %v86 = vsel %vm85, %v80, %v84
    %v87 = vmul.f32 %v52, %v86
    %v88 = vmul.f32 %v61, %v86
    %v89 = vmul.f32 %v70, %v86
    %v90 = vmul.f32 %v79, %v86
    %v91 = vsub.f32 %v28, %v87
    %v92 = vsub.f32 %v29, %v88
    %v93 = vsub.f32 %v30, %v87
    %v94 = vsub.f32 %v31, %v88
    %v95 = vsub.f32 %v32, %v87
    %v96 = vsub.f32 %v33, %v88
    %v97 = vsub.f32 %v34, %v87
    %v98 = vsub.f32 %v35, %v88
    %v99 = vsub.f32 %v36, %v89
    %v100 = vsub.f32 %v37, %v90
    %v101 = vsub.f32 %v38, %v89
    %v102 = vsub.f32 %v39, %v90
    %v103 = vsub.f32 %v40, %v89
    %v104 = vsub.f32 %v41, %v90
    %v105 = vsub.f32 %v42, %v89
    %v106 = vsub.f32 %v43, %v90
    %v107 = vmul.f32 %v91, %v91
    %v108 = vmul.f32 %v92, %v92
    %v109 = vmul.f32 %v93, %v93
    %v110 = vmul.f32 %v94, %v94
    %v111 = vmul.f32 %v95, %v95
    %v112 = vmul.f32 %v96, %v96
    %v113 = vmul.f32 %v97, %v97
    %v114 = vmul.f32 %v98, %v98
    %v115 = vmul.f32 %v99, %v99
    %v116 = vmul.f32 %v100, %v100
    %v117 = vmul.f32 %v101, %v101
    %v118 = vmul.f32 %v102, %v102
    %v119 = vmul.f32 %v103, %v103
    %v120 = vmul.f32 %v104, %v104
    %v121 = vmul.f32 %v105, %v105
    %v122 = vmul.f32 %v106, %v106
    %v123 = vadd.f32 %v107, %v109
    %v124 = vadd.f32 %v123, %v111
    %v125 = vadd.f32 %v124, %v113
    %v126 = vrot.slane %v125, 4
    %v127 = vadd.f32 %v125, %v126
    %v128 = vrot.slane %v127, 2
    %v129 = vadd.f32 %v127, %v128
    %v130 = vrot.slane %v129, 1
    %v131 = vadd.f32 %v129, %v130
    %v132 = vadd.f32 %v108, %v110
    %v133 = vadd.f32 %v132, %v112
    %v134 = vadd.f32 %v133, %v114
    %v135 = vrot.slane %v134, 4
    %v136 = vadd.f32 %v134, %v135
    %v137 = vrot.slane %v136, 2
    %v138 = vadd.f32 %v136, %v137
    %v139 = vrot.slane %v138, 1
    %v140 = vadd.f32 %v138, %v139
    %v141 = vadd.f32 %v115, %v117
    %v142 = vadd.f32 %v141, %v119
    %v143 = vadd.f32 %v142, %v121
    %v144 = vrot.slane %v143, 4
    %v145 = vadd.f32 %v143, %v144
    %v146 = vrot.slane %v145, 2
    %v147 = vadd.f32 %v145, %v146
    %v148 = vrot.slane %v147, 1
    %v149 = vadd.f32 %v147, %v148
    %v150 = vadd.f32 %v116, %v118
    %v151 = vadd.f32 %v150, %v120
    %v152 = vadd.f32 %v151, %v122
    %v153 = vrot.slane %v152, 4
    %v154 = vadd.f32 %v152, %v153
    %v155 = vrot.slane %v154, 2
    %v156 = vadd.f32 %v154, %v155
    %v157 = vrot.slane %v156, 1
    %v158 = vadd.f32 %v156, %v157
    %v159 = vmul.f32 %v131, %v86
    %v160 = vmul.f32 %v140, %v86
    %v161 = vmul.f32 %v149, %v86
    %v162 = vmul.f32 %v158, %v86
    %v163 = vadd.f32 %v159, 1e-05
    %v164 = vadd.f32 %v160, 1e-05
    %v165 = vadd.f32 %v161, 1e-05
    %v166 = vadd.f32 %v162, 1e-05
    %v167 = vrsqrt.pop %v163
    %v168 = vmul.f32 %v167, %v163
    %v169 = vmul.f32 %v168, %v167
    %v170 = vmul.f32 0.5, %v169
    %v171 = vsub.f32 1.5, %v170
    %v172 = vmul.f32 %v167, %v171
    %vm173 = vweird.f32 %v163
    %vm174 = vweird.f32 %v167
    %vm175 = vmor %vm173, %vm174
    %v176 = vsel %vm175, %v167, %v172
    %v177 = vrsqrt.pop %v164
    %v178 = vmul.f32 %v177, %v164
    %v179 = vmul.f32 %v178, %v177
    %v180 = vmul.f32 0.5, %v179
    %v181 = vsub.f32 1.5, %v180
    %v182 = vmul.f32 %v177, %v181
    %vm183 = vweird.f32 %v164
    %vm184 = vweird.f32 %v177
    %vm185 = vmor %vm183, %vm184
    %v186 = vsel %vm185, %v177, %v182
    %v187 = vrsqrt.pop %v165
    %v188 = vmul.f32 %v187, %v165
    %v189 = vmul.f32 %v188, %v187
    %v190 = vmul.f32 0.5, %v189
    %v191 = vsub.f32 1.5, %v190
    %v192 = vmul.f32 %v187, %v191
    %vm193 = vweird.f32 %v165
    %vm194 = vweird.f32 %v187
    %vm195 = vmor %vm193, %vm194
    %v196 = vsel %vm195, %v187, %v192
    %v197 = vrsqrt.pop %v166
    %v198 = vmul.f32 %v197, %v166
    %v199 = vmul.f32 %v198, %v197
    %v200 = vmul.f32 0.5, %v199
    %v201 = vsub.f32 1.5, %v200
    %v202 = vmul.f32 %v197, %v201
    %vm203 = vweird.f32 %v166
    %vm204 = vweird.f32 %v197
    %vm205 = vmor %vm203, %vm204
    %v206 = vsel %vm205, %v197, %v202
    %v207 = vmul.f32 %v91, %v176
    %v208 = vmul.f32 %v92, %v186
    %v209 = vmul.f32 %v93, %v176
    %v210 = vmul.f32 %v94, %v186
    %v211 = vmul.f32 %v95, %v176
    %v212 = vmul.f32 %v96, %v186
    %v213 = vmul.f32 %v97, %v176
    %v214 = vmul.f32 %v98, %v186
    %v215 = vmul.f32 %v99, %v196
    %v216 = vmul.f32 %v100, %v206
    %v217 = vmul.f32 %v101, %v196
    %v218 = vmul.f32 %v102, %v206
    %v219 = vmul.f32 %v103, %v196
    %v220 = vmul.f32 %v104, %v206
    %v221 = vmul.f32 %v105, %v196
    %v222 = vmul.f32 %v106, %v206
    %v223 = vld [vmem:[%s1] sm:$0xff]
    %v224 = vld [vmem:[%s1 + $0x8] sm:$0xff]
    %v225 = vld [vmem:[%s1 + $0x10] sm:$0xff]
    %v226 = vld [vmem:[%s1 + $0x18] sm:$0xff]
    %228 = vset.pattern.permute.xlu0 0
    %229 = vperm.xlu0 %228, %v223
    %v230 = vpop.permute.xlu0 %229
    %233 = vset.pattern.permute.xlu0 0
    %234 = vperm.xlu0 %233, %v224
    %v235 = vpop.permute.xlu0 %234
    %238 = vset.pattern.permute.xlu0 0
    %239 = vperm.xlu0 %238, %v225
    %v240 = vpop.permute.xlu0 %239
    %243 = vset.pattern.permute.xlu0 0
    %244 = vperm.xlu0 %243, %v226
    %v245 = vpop.permute.xlu0 %244
    %v247 = vmul.f32 %v207, %v230
    %v248 = vmul.f32 %v208, %v230
    %v249 = vmul.f32 %v209, %v235
    %v250 = vmul.f32 %v210, %v235
    %v251 = vmul.f32 %v211, %v240
    %v252 = vmul.f32 %v212, %v240
    %v253 = vmul.f32 %v213, %v245
    %v254 = vmul.f32 %v214, %v245
    %v255 = vmul.f32 %v215, %v230
    %v256 = vmul.f32 %v216, %v230
    %v257 = vmul.f32 %v217, %v235
    %v258 = vmul.f32 %v218, %v235
    %v259 = vmul.f32 %v219, %v240
    %v260 = vmul.f32 %v220, %v240
    %v261 = vmul.f32 %v221, %v245
    %v262 = vmul.f32 %v222, %v245
    %263 = vst [vmem:[#allocation5] sm:$0xff] %v247
    %264 = vst [vmem:[#allocation5 + $0x8] sm:$0xff] %v248
    %265 = vst [vmem:[#allocation5 + $0x10] sm:$0xff] %v249
    %266 = vst [vmem:[#allocation5 + $0x18] sm:$0xff] %v250
    %267 = vst [vmem:[#allocation5 + $0x20] sm:$0xff] %v251
    %268 = vst [vmem:[#allocation5 + $0x28] sm:$0xff] %v252
    %269 = vst [vmem:[#allocation5 + $0x30] sm:$0xff] %v253
    %270 = vst [vmem:[#allocation5 + $0x38] sm:$0xff] %v254
    %271 = vst [vmem:[#allocation5 + $0x40] sm:$0xff] %v255
    %272 = vst [vmem:[#allocation5 + $0x48] sm:$0xff] %v256
    %273 = vst [vmem:[#allocation5 + $0x50] sm:$0xff] %v257
    %274 = vst [vmem:[#allocation5 + $0x58] sm:$0xff] %v258
    %275 = vst [vmem:[#allocation5 + $0x60] sm:$0xff] %v259
    %276 = vst [vmem:[#allocation5 + $0x68] sm:$0xff] %v260
    %277 = vst [vmem:[#allocation5 + $0x70] sm:$0xff] %v261
    %278 = vst [vmem:[#allocation5 + $0x78] sm:$0xff] %v262
    // Predicated region
    $region14: #{tpu_custom_call.1} parent=1 // pred_check
      _
    $region15: #{tpu_custom_call.1} parent=1 // pred_check_branch
      %280 = sbr.rel (0) target = $region17
    $region16: #{tpu_custom_call.1} parent=1 // pred_region
      %282 = vsyncadd [#allocation4], 0
      %s283 = sshll.u32 [#allocation5], 4
      %s284 = int_to_ptr.vmem [resolvable:$true] %s283
      %s285 = sshll.u32 %s2, 4
      %s286 = int_to_ptr.hbm [resolvable:$true] %s285
      %291 = dma.vmem_to_hbm [thread:$0]  %s284, 2048, %s286, [#allocation4], 256, 256, 16
    $region17: #{tpu_custom_call.1} parent=1 // pred_fallthru
      _
    // Predicated region
    $region18: #{tpu_custom_call.1} parent=1 // pred_check
      _
    $region19: #{tpu_custom_call.1} parent=1 // pred_check_branch
      %293 = sbr.rel (0) target = $region21
    $region20: #{tpu_custom_call.1} parent=1 // pred_region
      %295 = dma.done [#allocation4], 2048
    $region21: #{tpu_custom_call.1} parent=1 // pred_fallthru
      _
    %296 = vsyncpa [#allocation3], 1
    %297 = vsyncpa [#allocation4], 1

</llo_original>
